<compile_context>
chip_gen: v7x
topology: tpu7x:2x2x1
jax: 0.10.0
libtpu: 0.0.40
codegen_flags: <defaults>
</compile_context>

<pallas_src>
import functools

import jax
import jax.numpy as jnp
from jax.experimental import pallas as pl
from jax.experimental.pallas import tpu as pltpu

HIDDEN = 128  # affine1 output width (fixed by the module)


def _round_up(x, m):
    return (x + m - 1) // m * m


def policy_kernel(x_ref, w1_ref, b1_ref, w2_ref, b2_ref, out_ref, *, num_actions):
    # affine1 + ReLU : (TB, obs_dim) @ (obs_dim, 128)  -- unpadded K, MXU handles it
    h = jnp.dot(x_ref[...], w1_ref[...],
                preferred_element_type=jnp.float32) + b1_ref[...]
    h = jnp.maximum(h, 0.0)

    # fused action+value head : (TB, 128) @ (128, OUT) -- one MXU pass
    z = jnp.dot(h, w2_ref[...],
                preferred_element_type=jnp.float32) + b2_ref[...]

    lane = jax.lax.broadcasted_iota(jnp.int32, z.shape, 1)
    is_action = lane < num_actions

    # softmax over the real action lanes only (padded lanes -> -inf -> exp 0)
    scores = jnp.where(is_action, z, -jnp.inf)
    m = jnp.max(scores, axis=-1, keepdims=True)
    e = jnp.exp(scores - m)
    denom = jnp.sum(e, axis=-1, keepdims=True)
    probs = e / denom  # exact division (kernel is HBM-bound; VPU/EUP work is free)

    # compact output slab: probs in [0:A], state value in lane A, zeros elsewhere
    out = jnp.where(is_action, probs, 0.0)
    out = jnp.where(lane == num_actions, z, out)
    out_ref[...] = out


def pack_params(w1, b1, wa, ba, wv, bv):
    """One-time packing: fuse action+value heads into a single lane-padded weight.

    Done at init (hoisted out of the per-step forward path). Weights are in
    (in, out) layout; biases (1, out).
    """
    num_actions = wa.shape[1]
    out_w = max(8, _round_up(num_actions + 1, 8))
    w2 = (jnp.zeros((HIDDEN, out_w), jnp.float32)
          .at[:, :num_actions].set(wa)
          .at[:, num_actions:num_actions + 1].set(wv))
    b2 = (jnp.zeros((1, out_w), jnp.float32)
          .at[:, :num_actions].set(ba)
          .at[:, num_actions:num_actions + 1].set(bv))
    return w1.astype(jnp.float32), b1.astype(jnp.float32), w2, b2


def policy_forward(x, w1, b1, w2, b2, *, num_actions, block_b=1024):
    """x: (B, obs_dim) f32. w1: (obs_dim, 128), b1: (1, 128); w2/b2 from pack_params."""
    B, obs_dim = x.shape
    out_w = w2.shape[1]
    assert w1.shape == (obs_dim, HIDDEN)
    assert num_actions + 1 <= out_w

    # Batch tiling: sublane-multiple tiles. At tb=1024 the pipelined per-step
    # footprint (x + out, double-buffered, + ~70 KiB weights) is a few MiB —
    # far inside scoped VMEM on every generation.
    b_pad = _round_up(B, 8)
    tb = min(block_b, b_pad)
    # v7x: keep >= 2 grid steps when the batch allows it so the "parallel"
    # batch axis can shard across both TensorCores.
    if b_pad // tb == 1 and b_pad >= 16:
        tb = _round_up(b_pad // 2, 8)
    b_pad = _round_up(B, tb)

    x_p = x if b_pad == B else jnp.zeros((b_pad, obs_dim), x.dtype).at[:B].set(x)

    cost = pl.CostEstimate(
        flops=2 * b_pad * (obs_dim * HIDDEN + HIDDEN * out_w),
        transcendentals=b_pad * out_w,
        bytes_accessed=4 * (b_pad * obs_dim + obs_dim * HIDDEN + HIDDEN
                            + HIDDEN * out_w + out_w + b_pad * out_w),
    )

    out = pl.pallas_call(
        functools.partial(policy_kernel, num_actions=num_actions),
        out_shape=jax.ShapeDtypeStruct((b_pad, out_w), jnp.float32),
        grid_spec=pltpu.PrefetchScalarGridSpec(
            num_scalar_prefetch=0,
            grid=(b_pad // tb,),
            in_specs=[
                pl.BlockSpec((tb, obs_dim), lambda i: (i, 0)),       # x tile (pipelined)
                pl.BlockSpec((obs_dim, HIDDEN), lambda i: (0, 0)),   # W1 (VMEM-resident)
                pl.BlockSpec((1, HIDDEN), lambda i: (0, 0)),         # b1
                pl.BlockSpec((HIDDEN, out_w), lambda i: (0, 0)),     # fused W2
                pl.BlockSpec((1, out_w), lambda i: (0, 0)),          # fused b2
            ],
            out_specs=pl.BlockSpec((tb, out_w), lambda i: (i, 0)),
        ),
        compiler_params=pltpu.CompilerParams(
            dimension_semantics=("parallel",)),
        cost_estimate=cost,
    )(x_p, w1, b1, w2, b2)

    probs = out[:B, :num_actions]
    values = out[:B, num_actions:num_actions + 1]
    return probs, values


def make_params(key, obs_dim, hidden, num_actions):
    """Deterministic synthetic parameters (PyTorch Linear shapes, stored transposed)."""
    ks = jax.random.split(key, 6)

    # PyTorch nn.Linear: weight (out, in) init U(-1/sqrt(in), 1/sqrt(in)); we store (in, out).
    def lin(kw, kb, fan_in, fan_out):
        bound = 1.0 / jnp.sqrt(fan_in)
        w = jax.random.uniform(kw, (fan_in, fan_out), jnp.float32, -bound, bound)
        b = jax.random.uniform(kb, (1, fan_out), jnp.float32, -bound, bound)
        return w, b

    w1, b1 = lin(ks[0], ks[1], obs_dim, hidden)
    wa, ba = lin(ks[2], ks[3], hidden, num_actions)
    wv, bv = lin(ks[4], ks[5], hidden, 1)
    return w1, b1, wa, ba, wv, bv


if __name__ == "__main__":
    # Small shapes consistent with a gym env (e.g. CartPole): obs_dim=4, num_actions=2.
    batch, obs_dim, hidden, num_actions = 2, 4, 128, 2

    key = jax.random.PRNGKey(0)
    k_x, k_p = jax.random.split(key)
    x = jax.random.normal(k_x, (batch, obs_dim), jnp.float32)
    w1, b1, wa, ba, wv, bv = make_params(k_p, obs_dim, hidden, num_actions)

    # One-time weight packing (hoisted out of the forward path).
    packed = pack_params(w1, b1, wa, ba, wv, bv)

    fwd = jax.jit(functools.partial(policy_forward, num_actions=num_actions))
    probs, values = fwd(x, *packed)
    jax.block_until_ready((probs, values))

    # Reference check in plain JAX (unfused, unpadded).
    h_ref = jnp.maximum(x @ w1 + b1, 0.0)
    probs_ref = jax.nn.softmax(h_ref @ wa + ba, axis=-1)
    values_ref = h_ref @ wv + bv

    assert probs.shape == (batch, num_actions) and values.shape == (batch, 1)
    assert jnp.allclose(probs, probs_ref, atol=1e-4), "action probs mismatch"
    assert jnp.allclose(values, values_ref, atol=1e-4), "state values mismatch"
    assert bool(jnp.all(jnp.abs(jnp.sum(probs, axis=-1) - 1.0) < 1e-4))

    print("KERNEL_OK")
</pallas_src>

<mosaic_0001>
module attributes {stable_mosaic.version = 11 : i64} {
  func.func @policy_kernel(%arg0: i32, %arg1: memref<8x4xf32, #tpu.memory_space<vmem>>, %arg2: memref<4x128xf32, #tpu.memory_space<vmem>>, %arg3: memref<1x128xf32, #tpu.memory_space<vmem>>, %arg4: memref<128x8xf32, #tpu.memory_space<vmem>>, %arg5: memref<1x8xf32, #tpu.memory_space<vmem>>, %arg6: memref<8x8xf32, #tpu.memory_space<vmem>>) attributes {dimension_semantics = [#tpu.dimension_semantics<parallel>], iteration_bounds = array<i64: 1>, scalar_prefetch = 0 : i64, scratch_operands = 0 : i64, tpu.core_type = #tpu.core_type<tc>, window_params = [{transform_indices = @transform_0, window_bounds = array<i64: 8, 4>}, {pipeline_mode = #tpu.pipeline_mode<synchronous>, transform_indices = @transform_1, window_bounds = array<i64: 4, 128>}, {pipeline_mode = #tpu.pipeline_mode<synchronous>, transform_indices = @transform_2, window_bounds = array<i64: 1, 128>}, {pipeline_mode = #tpu.pipeline_mode<synchronous>, transform_indices = @transform_3, window_bounds = array<i64: 128, 8>}, {pipeline_mode = #tpu.pipeline_mode<synchronous>, transform_indices = @transform_4, window_bounds = array<i64: 1, 8>}, {transform_indices = @transform_5, window_bounds = array<i64: 8, 8>}]} {
    %c0 = arith.constant 0 : index
    %c0_0 = arith.constant 0 : index
    %0 = vector.load %arg1[%c0, %c0_0] : memref<8x4xf32, #tpu.memory_space<vmem>>, vector<8x4xf32>
    %c0_1 = arith.constant 0 : index
    %c0_2 = arith.constant 0 : index
    %1 = vector.load %arg2[%c0_1, %c0_2] : memref<4x128xf32, #tpu.memory_space<vmem>>, vector<4x128xf32>
    %cst = arith.constant dense<0.000000e+00> : vector<8x128xf32>
    %2 = tpu.matmul %0, %1, %cst {dimension_numbers = #tpu.dot_dimension_numbers<[1], [0], [0], [1], [0, 0, 1, 1], [], []>} : vector<8x4xf32>, vector<4x128xf32>, vector<8x128xf32> -> vector<8x128xf32>
    %c0_3 = arith.constant 0 : index
    %c0_4 = arith.constant 0 : index
    %3 = vector.load %arg3[%c0_3, %c0_4] : memref<1x128xf32, #tpu.memory_space<vmem>>, vector<1x128xf32>
    %4 = vector.broadcast %3 : vector<1x128xf32> to vector<8x128xf32>
    %5 = arith.addf %2, %4 : vector<8x128xf32>
    %cst_5 = arith.constant 0.000000e+00 : f32
    %6 = vector.broadcast %cst_5 : f32 to vector<8x128xf32>
    %7 = arith.maximumf %5, %6 : vector<8x128xf32>
    %c0_6 = arith.constant 0 : index
    %c0_7 = arith.constant 0 : index
    %8 = vector.load %arg4[%c0_6, %c0_7] : memref<128x8xf32, #tpu.memory_space<vmem>>, vector<128x8xf32>
    %cst_8 = arith.constant dense<0.000000e+00> : vector<8x8xf32>
    %9 = tpu.matmul %7, %8, %cst_8 {dimension_numbers = #tpu.dot_dimension_numbers<[1], [0], [0], [1], [0, 0, 1, 1], [], []>} : vector<8x128xf32>, vector<128x8xf32>, vector<8x8xf32> -> vector<8x8xf32>
    %c0_9 = arith.constant 0 : index
    %c0_10 = arith.constant 0 : index
    %10 = vector.load %arg5[%c0_9, %c0_10] : memref<1x8xf32, #tpu.memory_space<vmem>>, vector<1x8xf32>
    %11 = vector.broadcast %10 : vector<1x8xf32> to vector<8x8xf32>
    %12 = arith.addf %9, %11 : vector<8x8xf32>
    %13 = tpu.iota {dimensions = array<i32: 1>} : vector<8x8xi32>
    %c2_i32 = arith.constant 2 : i32
    %14 = vector.broadcast %c2_i32 : i32 to vector<8x8xi32>
    %15 = arith.cmpi slt, %13, %14 : vector<8x8xi32>
    %cst_11 = arith.constant 0xFF800000 : f32
    %16 = vector.broadcast %cst_11 : f32 to vector<8x8xf32>
    %17 = arith.select %15, %12, %16 : vector<8x8xi1>, vector<8x8xf32>
    %cst_12 = arith.constant dense<0xFF800000> : vector<8xf32>
    %18 = vector.multi_reduction <maximumf>, %17, %cst_12 [1] : vector<8x8xf32> to vector<8xf32>
    %19 = vector.shape_cast %18 : vector<8xf32> to vector<8x1xf32>
    %20 = vector.broadcast %19 : vector<8x1xf32> to vector<8x8xf32>
    %21 = arith.subf %17, %20 : vector<8x8xf32>
    %22 = math.exp %21 : vector<8x8xf32>
    %cst_13 = arith.constant dense<0.000000e+00> : vector<8xf32>
    %23 = vector.multi_reduction <add>, %22, %cst_13 [1] : vector<8x8xf32> to vector<8xf32>
    %24 = vector.shape_cast %23 : vector<8xf32> to vector<8x1xf32>
    %25 = vector.broadcast %24 : vector<8x1xf32> to vector<8x8xf32>
    %26 = arith.divf %22, %25 : vector<8x8xf32>
    %cst_14 = arith.constant 0.000000e+00 : f32
    %27 = vector.broadcast %cst_14 : f32 to vector<8x8xf32>
    %28 = arith.select %15, %26, %27 : vector<8x8xi1>, vector<8x8xf32>
    %c2_i32_15 = arith.constant 2 : i32
    %29 = vector.broadcast %c2_i32_15 : i32 to vector<8x8xi32>
    %30 = arith.cmpi eq, %13, %29 : vector<8x8xi32>
    %31 = arith.select %30, %12, %28 : vector<8x8xi1>, vector<8x8xf32>
    %c0_16 = arith.constant 0 : index
    %c0_17 = arith.constant 0 : index
    %32 = vector.load %arg6[%c0_16, %c0_17] : memref<8x8xf32, #tpu.memory_space<vmem>>, vector<8x8xf32>
    tpu.vector_store %arg6[%c0_16, %c0_17], %31 {strides = array<i32>} : memref<8x8xf32, #tpu.memory_space<vmem>>, vector<8x8xf32>,
    return
  }
  func.func @transform_0(%arg0: i32) -> (i32, i32) {
    %c0_i32 = arith.constant 0 : i32
    %c0_i32_0 = arith.constant 0 : i32
    return %arg0, %c0_i32 : i32, i32
  }
  func.func @transform_1(%arg0: i32) -> (i32, i32) {
    %c0_i32 = arith.constant 0 : i32
    %c0_i32_0 = arith.constant 0 : i32
    %c0_i32_1 = arith.constant 0 : i32
    return %c0_i32, %c0_i32_0 : i32, i32
  }
  func.func @transform_2(%arg0: i32) -> (i32, i32) {
    %c0_i32 = arith.constant 0 : i32
    %c0_i32_0 = arith.constant 0 : i32
    %c0_i32_1 = arith.constant 0 : i32
    return %c0_i32, %c0_i32_0 : i32, i32
  }
  func.func @transform_3(%arg0: i32) -> (i32, i32) {
    %c0_i32 = arith.constant 0 : i32
    %c0_i32_0 = arith.constant 0 : i32
    %c0_i32_1 = arith.constant 0 : i32
    return %c0_i32, %c0_i32_0 : i32, i32
  }
  func.func @transform_4(%arg0: i32) -> (i32, i32) {
    %c0_i32 = arith.constant 0 : i32
    %c0_i32_0 = arith.constant 0 : i32
    %c0_i32_1 = arith.constant 0 : i32
    return %c0_i32, %c0_i32_0 : i32, i32
  }
  func.func @transform_5(%arg0: i32) -> (i32, i32) {
    %c0_i32 = arith.constant 0 : i32
    %c0_i32_0 = arith.constant 0 : i32
    return %arg0, %c0_i32 : i32, i32
  }
}

</mosaic_0001>

<llo_original>
// kernel: policy_forward.1
$region0: #{policy_forward.1}
  #allocation0 [shape = 'u32[]', space=smem, size = 0x4, offset = 0x4, fixed_abs, tag = 'smem constant byte address 0x4 - core index']
  #allocation1 [shape = 'u32[144,128]{1,0:T(1,128)}', space=vmem, size = 0x12000, scoped, tag = 'internal scratch']
  %s0 = inlined_call_operand.vmem [shape: f32[8,4], index: 0, kind: input, shape index: {}]
  %s1 = inlined_call_operand.vmem [shape: f32[4,128], index: 1, kind: input, shape index: {}]
  %s2 = inlined_call_operand.vmem [shape: f32[1,128], index: 2, kind: input, shape index: {}]
  %s3 = inlined_call_operand.vmem [shape: f32[128,8], index: 3, kind: input, shape index: {}]
  %s4 = inlined_call_operand.vmem [shape: f32[1,8], index: 4, kind: input, shape index: {}]
  %s5 = inlined_call_operand.vmem [shape: f32[8,8], index: 5, kind: output, shape index: {}]
  %s6 = sld [smem:[#allocation0]]
  $region30: #{policy_forward.1} parent=0
    _
  %s8 = ssub.s32 1, %s6
  %s9 = scalar_select 0, %s8, %s6
  // Predicated region
  $region2: #{policy_forward.1} parent=0 // pred_check
    _
  $region3: #{policy_forward.1} parent=0 // pred_check_branch
    %11 = sbr.rel (0) target = $region5
  $region4: #{policy_forward.1} parent=0 // pred_region
    _
  $region5: #{policy_forward.1} parent=0 // pred_fallthru
    _
  // Predicated region
  $region6: #{policy_forward.1} parent=0 // pred_check
    _
  $region7: #{policy_forward.1} parent=0 // pred_check_branch
    %13 = sbr.rel (0) target = $region9
  $region8: #{policy_forward.1} parent=0 // pred_region
    _
  $region9: #{policy_forward.1} parent=0 // pred_fallthru
    _
  // Predicated region
  $region10: #{policy_forward.1} parent=0 // pred_check
    _
  $region11: #{policy_forward.1} parent=0 // pred_check_branch
    %15 = sbr.rel (0) target = $region13
  $region12: #{policy_forward.1} parent=0 // pred_region
    _
  $region13: #{policy_forward.1} parent=0 // pred_fallthru
    _
  // Predicated region
  $region14: #{policy_forward.1} parent=0 // pred_check
    _
  $region15: #{policy_forward.1} parent=0 // pred_check_branch
    %17 = sbr.rel (0) target = $region17
  $region16: #{policy_forward.1} parent=0 // pred_region
    _
  $region17: #{policy_forward.1} parent=0 // pred_fallthru
    _
  // Predicated region
  $region18: #{policy_forward.1} parent=0 // pred_check
    _
  $region19: #{policy_forward.1} parent=0 // pred_check_branch
    %19 = sbr.rel (0) target = $region21
  $region20: #{policy_forward.1} parent=0 // pred_region
    _
  $region21: #{policy_forward.1} parent=0 // pred_fallthru
    _
  %v20 = vld [vmem:[%s0] sm:$0xff]
  %v21 = vld [vmem:[%s1] sm:$0xf]
  %v22 = vld [vmem:[%s2] sm:$0x1]
  %v24 = vlaneseq
  %v25 = vshrl.u32 %v24, 7
  %v26 = vsub.s32 0, %v25
  %v27 = vrot.slane %v22, %v26
  %vm29 = vcmask 31744
  %v31 = vsel %vm29, %v20, 0
  %vm33 = vcmask 1043456
  %v35 = vsel %vm33, %v21, 0
  %37 = vmatprep.subr.mxu0 0.0
  %38 = vmatpush1.msra.mxu0 %v35
  %39 = vmatprep.subr.mxu0 0.0
  %40 = vmatpush1.msra.mxu0 0.0
  %41 = vmatprep.subr.mxu0 0.0
  %42 = vmatpush1.msra.mxu0 0.0
  %43 = vmatprep.subr.mxu0 0.0
  %44 = vmatpush1.msra.mxu0 0.0
  %45 = vmatprep.subr.mxu0 0.0
  %46 = vmatpush1.msra.mxu0 0.0
  %47 = vmatprep.subr.mxu0 0.0
  %48 = vmatpush1.msra.mxu0 0.0
  %49 = vmatprep.subr.mxu0 0.0
  %50 = vmatpush1.msra.mxu0 0.0
  %51 = vmatprep.subr.mxu0 0.0
  %52 = vmatpush1.msra.mxu0 0.0
  %53 = vmatprep.subr.mxu0 0.0
  %54 = vmatpush1.msra.mxu0 0.0
  %55 = vmatprep.subr.mxu0 0.0
  %56 = vmatpush1.msra.mxu0 0.0
  %57 = vmatprep.subr.mxu0 0.0
  %58 = vmatpush1.msra.mxu0 0.0
  %59 = vmatprep.subr.mxu0 0.0
  %60 = vmatpush1.msra.mxu0 0.0
  %61 = vmatprep.subr.mxu0 0.0
  %62 = vmatpush1.msra.mxu0 0.0
  %63 = vmatprep.subr.mxu0 0.0
  %64 = vmatpush1.msra.mxu0 0.0
  %65 = vmatprep.subr.mxu0 0.0
  %66 = vmatpush1.msra.mxu0 0.0
  %67 = vmatprep.subr.mxu0 0.0
  %68 = vmatpush1.msra.mxu0 0.0
  %69 = vmatprep.subr.mxu0 0.0
  %70 = vmatpush1.msra.mxu0 0.0
  %71 = vmatprep.subr.mxu0 0.0
  %72 = vmatpush1.msra.mxu0 0.0
  %73 = vmatprep.subr.mxu0 0.0
  %74 = vmatpush1.msra.mxu0 0.0
  %75 = vmatprep.subr.mxu0 0.0
  %76 = vmatpush1.msra.mxu0 0.0
  %77 = vmatprep.subr.mxu0 0.0
  %78 = vmatpush1.msra.mxu0 0.0
  %79 = vmatprep.subr.mxu0 0.0
  %80 = vmatpush1.msra.mxu0 0.0
  %81 = vmatprep.subr.mxu0 0.0
  %82 = vmatpush1.msra.mxu0 0.0
  %83 = vmatprep.subr.mxu0 0.0
  %84 = vmatpush1.msra.mxu0 0.0
  %85 = vmatprep.subr.mxu0 0.0
  %86 = vmatpush1.msra.mxu0 0.0
  %87 = vmatprep.subr.mxu0 0.0
  %88 = vmatpush1.msra.mxu0 0.0
  %89 = vmatprep.subr.mxu0 0.0
  %90 = vmatpush1.msra.mxu0 0.0
  %91 = vmatprep.subr.mxu0 0.0
  %92 = vmatpush1.msra.mxu0 0.0
  %93 = vmatprep.subr.mxu0 0.0
  %94 = vmatpush1.msra.mxu0 0.0
  %95 = vmatprep.subr.mxu0 0.0
  %96 = vmatpush1.msra.mxu0 0.0
  %97 = vmatprep.subr.mxu0 0.0
  %98 = vmatpush1.msra.mxu0 0.0
  %99 = vmatprep.subr.mxu0 0.0
  %100 = vmatpush1.msra.mxu0 0.0
  %101 = vmatprep.mubr.f32.mxu0 0.0
  %102 = vmatmul.mubr.f32.gmra.mrb[0].mxu0 %v31
  %v103 = vpop.f32.mrb[0].mxu0
  %v104 = vadd.f32 %v27, %v103
  %v105 = vpop.f32.mrb[0].mxu0
  %106 = vdwg.mxu0
  %v107 = vmax.f32 %v104, 0.0
  %v108 = vld [vmem:[%s3] sm:$0xff]
  %v109 = vld [vmem:[%s3 + $0x8] sm:$0xff]
  %v110 = vld [vmem:[%s3 + $0x10] sm:$0xff]
  %v111 = vld [vmem:[%s3 + $0x18] sm:$0xff]
  %v112 = vld [vmem:[%s3 + $0x20] sm:$0xff]
  %v113 = vld [vmem:[%s3 + $0x28] sm:$0xff]
  %v114 = vld [vmem:[%s3 + $0x30] sm:$0xff]
  %v115 = vld [vmem:[%s3 + $0x38] sm:$0xff]
  %v116 = vld [vmem:[%s3 + $0x40] sm:$0xff]
  %v117 = vld [vmem:[%s3 + $0x48] sm:$0xff]
  %v118 = vld [vmem:[%s3 + $0x50] sm:$0xff]
  %v119 = vld [vmem:[%s3 + $0x58] sm:$0xff]
  %v120 = vld [vmem:[%s3 + $0x60] sm:$0xff]
  %v121 = vld [vmem:[%s3 + $0x68] sm:$0xff]
  %v122 = vld [vmem:[%s3 + $0x70] sm:$0xff]
  %v123 = vld [vmem:[%s3 + $0x78] sm:$0xff]
  %v124 = vld [vmem:[%s4] sm:$0x1]
  %v126 = vlaneseq
  %v127 = vshrl.u32 %v126, 7
  %v128 = vsub.s32 0, %v127
  %v129 = vrot.slane %v124, %v128
  %131 = vmatprep.subr.mxu0 0.0
  %132 = vmatpush1.msra.mxu0 %v108
  %133 = vmatprep.subr.mxu0 0.0
  %134 = vmatpush1.msra.mxu0 %v109
  %135 = vmatprep.subr.mxu0 0.0
  %136 = vmatpush1.msra.mxu0 %v110
  %137 = vmatprep.subr.mxu0 0.0
  %138 = vmatpush1.msra.mxu0 %v111
  %139 = vmatprep.subr.mxu0 0.0
  %140 = vmatpush1.msra.mxu0 %v112
  %141 = vmatprep.subr.mxu0 0.0
  %142 = vmatpush1.msra.mxu0 %v113
  %143 = vmatprep.subr.mxu0 0.0
  %144 = vmatpush1.msra.mxu0 %v114
  %145 = vmatprep.subr.mxu0 0.0
  %146 = vmatpush1.msra.mxu0 %v115
  %147 = vmatprep.subr.mxu0 0.0
  %148 = vmatpush1.msra.mxu0 %v116
  %149 = vmatprep.subr.mxu0 0.0
  %150 = vmatpush1.msra.mxu0 %v117
  %151 = vmatprep.subr.mxu0 0.0
  %152 = vmatpush1.msra.mxu0 %v118
  %153 = vmatprep.subr.mxu0 0.0
  %154 = vmatpush1.msra.mxu0 %v119
  %155 = vmatprep.subr.mxu0 0.0
  %156 = vmatpush1.msra.mxu0 %v120
  %157 = vmatprep.subr.mxu0 0.0
  %158 = vmatpush1.msra.mxu0 %v121
  %159 = vmatprep.subr.mxu0 0.0
  %160 = vmatpush1.msra.mxu0 %v122
  %161 = vmatprep.subr.mxu0 0.0
  %162 = vmatpush1.msra.mxu0 %v123
  %163 = vmatprep.subr.mxu0 0.0
  %164 = vmatpush1.msra.mxu0 0.0
  %165 = vmatprep.subr.mxu0 0.0
  %166 = vmatpush1.msra.mxu0 0.0
  %167 = vmatprep.subr.mxu0 0.0
  %168 = vmatpush1.msra.mxu0 0.0
  %169 = vmatprep.subr.mxu0 0.0
  %170 = vmatpush1.msra.mxu0 0.0
  %171 = vmatprep.subr.mxu0 0.0
  %172 = vmatpush1.msra.mxu0 0.0
  %173 = vmatprep.subr.mxu0 0.0
  %174 = vmatpush1.msra.mxu0 0.0
  %175 = vmatprep.subr.mxu0 0.0
  %176 = vmatpush1.msra.mxu0 0.0
  %177 = vmatprep.subr.mxu0 0.0
  %178 = vmatpush1.msra.mxu0 0.0
  %179 = vmatprep.subr.mxu0 0.0
  %180 = vmatpush1.msra.mxu0 0.0
  %181 = vmatprep.subr.mxu0 0.0
  %182 = vmatpush1.msra.mxu0 0.0
  %183 = vmatprep.subr.mxu0 0.0
  %184 = vmatpush1.msra.mxu0 0.0
  %185 = vmatprep.subr.mxu0 0.0
  %186 = vmatpush1.msra.mxu0 0.0
  %187 = vmatprep.subr.mxu0 0.0
  %188 = vmatpush1.msra.mxu0 0.0
  %189 = vmatprep.subr.mxu0 0.0
  %190 = vmatpush1.msra.mxu0 0.0
  %191 = vmatprep.subr.mxu0 0.0
  %192 = vmatpush1.msra.mxu0 0.0
  %193 = vmatprep.subr.mxu0 0.0
  %194 = vmatpush1.msra.mxu0 0.0
  %195 = vmatprep.mubr.f32.mxu0 0.0
  %196 = vmatmul.mubr.f32.gmra.mrb[0].mxu0 %v107
  %v197 = vpop.f32.mrb[0].mxu0
  %v198 = vadd.f32 %v129, %v197
  %v199 = vpop.f32.mrb[0].mxu0
  %200 = vdwg.mxu0
  %v201 = vlaneseq
  %v202 = vand.u32 %v201, 127
  %vm203 = vcmp.lt.s32.totalorder %v202, 2
  %v204 = vsel %vm203, %v198, -inf
  %vm205 = vcmask 64512
  %v206 = vsel %vm205, %v204, -inf
  %207 = vmax.xlane.f32.xlu0 %v206
  %v208 = vpop.xlane.xlu0 %207
  %v209 = vsub.f32 %v204, %v208
  %v210 = vmul.f32 %v209, 1.442695
  %v211 = vpow.pop %v210
  %v212 = vsel %vm205, %v211, 0.0
  %213 = vadd.xlane.f32.xlu0 %v212
  %v214 = vpop.xlane.xlu0 %213
  %v215 = vrcp.pop %v214
  %v216 = vmul.f32 %v211, %v215
  %v217 = vsel %vm203, %v216, 0.0
  %vm218 = vcmp.eq.s32.totalorder %v202, 2
  %v219 = vsel %vm218, %v198, %v217
  %220 = vst.msk [vmem:[%s5] sm:$0xff] %vm205, %v219
  // Predicated region
  $region22: #{policy_forward.1} parent=0 // pred_check
    _
  $region23: #{policy_forward.1} parent=0 // pred_check_branch
    %222 = sbr.rel (0) target = $region25
  $region24: #{policy_forward.1} parent=0 // pred_region
    _
  $region25: #{policy_forward.1} parent=0 // pred_fallthru
    _
  // Predicated region
  $region26: #{policy_forward.1} parent=0 // pred_check
    _
  $region27: #{policy_forward.1} parent=0 // pred_check_branch
    %224 = sbr.rel (0) target = $region29
  $region28: #{policy_forward.1} parent=0 // pred_region
    _
  $region29: #{policy_forward.1} parent=0 // pred_fallthru
    _

</llo_original>
